<compile_context>
chip_gen: v7x
topology: tpu7x:2x2x1
jax: 0.10.0
libtpu: 0.0.40
codegen_flags: <defaults>
</compile_context>

<pallas_src>
import functools

import jax
import jax.numpy as jnp
from jax.experimental import pallas as pl
from jax.experimental.pallas import tpu as pltpu


def _round_up(n, m):
    return (n + m - 1) // m * m


@functools.lru_cache(maxsize=None)
def _roll_matches_numpy() -> bool:
    """Probe pltpu.roll semantics once (np.roll: out[i] = x[i - shift]) so a
    semantics change across jax versions can never silently corrupt the taps."""
    def k(x_ref, o_ref):
        o_ref[...] = pltpu.roll(x_ref[...], 1, axis=1)

    x = jax.lax.broadcasted_iota(jnp.float32, (8, 128), 1)
    y = pl.pallas_call(k, out_shape=jax.ShapeDtypeStruct((8, 128), jnp.float32))(x)
    return bool(y[0, 0] == 127.0)


def _denoising_block_kernel(x_ref, m_ref,
                            w0, b0, a0, w1, b1, a1, w2, b2, a2, w3, b3, a3,
                            o_ref, patch_ref, *, H, W, seg_pad, roll_np):
    """One batch-block per grid step.  Channel-major (C, Bt*H*W) layout.

    patch_ref : (9*sum(seg_pad), Bt*H*W) bf16 VMEM im2col patches, built
                incrementally: segment-major, tap-major / channel-minor inside
                each segment.  All row offsets are multiples of 8.
    m_ref     : (9, Bt*H*W) f32 {0,1} halo-validity multipliers per tap.
    """
    L = patch_ref.shape[1]
    f32, bf16 = jnp.float32, jnp.bfloat16

    def pad_rows(v, rows):
        extra = rows - v.shape[0]
        if extra > 0:
            v = jnp.concatenate([v, jnp.zeros((extra, v.shape[1]), v.dtype)], axis=0)
        return v

    def shifted(t, s):
        # out[:, p] = t[:, p + s]; wrapped / cross-image entries are zeroed by m_ref.
        if s == 0:
            return t
        shift = (-s if roll_np else s) % L
        return pltpu.roll(t, shift, axis=1)

    def build_taps(vals_f32, seg_idx, seg_off):
        """Append the 9 masked shifts of this segment's rows to the patch matrix."""
        rows = seg_pad[seg_idx]
        base = 9 * seg_off
        for ki in range(3):
            for kj in range(3):
                di, dj = ki - 1, kj - 1
                tap = ki * 3 + kj
                t = shifted(vals_f32, di * W + dj)
                if (di, dj) != (0, 0):
                    t = t * m_ref[tap:tap + 1, :]          # zero "same" padding
                patch_ref[base + tap * rows: base + (tap + 1) * rows, :] = t.astype(bf16)

    def conv_prelu(k_rows, w_ref, b_ref, a_ref):
        y = jnp.dot(w_ref[...], patch_ref[0:9 * k_rows, :],   # bf16 x bf16 MXU
                    preferred_element_type=f32)                # f32 accumulate
        y = y + b_ref[...]                                     # bias (Cout, 1)
        return jnp.where(y > 0.0, y, a_ref[...] * y)           # per-channel PReLU

    # Stage the input (kept in f32 for the residual), pad to 8-aligned rows.
    x_pad = pad_rows(x_ref[...].astype(f32), seg_pad[0])
    build_taps(x_pad, 0, 0)

    layers = ((w0, b0, a0), (w1, b1, a1), (w2, b2, a2), (w3, b3, a3))
    k_rows = seg_pad[0]
    y = None
    for l, (w_ref, b_ref, a_ref) in enumerate(layers):
        y = conv_prelu(k_rows, w_ref, b_ref, a_ref)
        if l < 3:                                              # dense concatenation
            build_taps(pad_rows(y, seg_pad[l + 1]), l + 1, k_rows)
            k_rows += seg_pad[l + 1]

    # Fused residual add; pad output rows are exactly zero (zero weight rows).
    o_ref[...] = (y + x_pad).astype(o_ref.dtype)


def _build_wmat(w_oihw, seg_real, seg_pad):
    """(Cout, Cin_real, 3, 3) -> (Cout, 9*sum(seg_pad)) im2col weight matrix.

    Column order = (segment, tap, padded-channel-within-segment), matching the
    incrementally built patch matrix; zero columns cover the pad rows."""
    co = w_oihw.shape[0]
    cols, start = [], 0
    for r, p in zip(seg_real, seg_pad):
        seg = w_oihw[:, start:start + r]                       # (Co, r, 3, 3)
        if p > r:
            seg = jnp.pad(seg, ((0, 0), (0, p - r), (0, 0), (0, 0)))
        seg = jnp.transpose(seg, (0, 2, 3, 1)).reshape(co, 9 * p)  # tap-major
        cols.append(seg)
        start += r
    return jnp.concatenate(cols, axis=1)


def _build_edge_masks(H, W, n_pack, dtype):
    """(9, n_pack*H*W) {0,1} halo-validity multipliers, one row per 3x3 tap."""
    hw = H * W
    p = jnp.arange(n_pack * hw) % hw
    row = p // W
    col = p % W
    masks = []
    for ki in range(3):
        for kj in range(3):
            di, dj = ki - 1, kj - 1
            ok = jnp.ones((n_pack * hw,), bool)
            if di == -1:
                ok = ok & (row >= 1)
            if di == 1:
                ok = ok & (row <= H - 2)
            if dj == -1:
                ok = ok & (col >= 1)
            if dj == 1:
                ok = ok & (col <= W - 2)
            masks.append(ok)
    return jnp.stack(masks).astype(dtype)


def init_denoising_block_params(key, in_channels, inner_channels, out_channels):
    """Deterministic synthetic parameters for the 4 conv + 4 PReLU layers."""
    cins = [in_channels,
            in_channels + inner_channels,
            in_channels + 2 * inner_channels,
            in_channels + 3 * inner_channels]
    couts = [inner_channels, inner_channels, inner_channels, out_channels]
    seg_real = (in_channels, inner_channels, inner_channels, inner_channels)
    seg_pad = tuple(_round_up(c, 8) for c in seg_real)
    cout_pad = _round_up(out_channels, 8)
    params = []
    for i, (ci, co) in enumerate(zip(cins, couts)):
        kw, kb, ka = jax.random.split(jax.random.fold_in(key, i), 3)
        w_oihw = 0.1 * jax.random.normal(kw, (co, ci, 3, 3), jnp.float32)
        b = 0.05 * jax.random.normal(kb, (co,), jnp.float32)
        a = 0.25 + 0.05 * jax.random.normal(ka, (co,), jnp.float32)   # PReLU slope
        wmat = _build_wmat(w_oihw, seg_real[:i + 1], seg_pad[:i + 1])
        bcol = b.reshape(-1, 1)
        acol = a.reshape(-1, 1)
        if i == 3 and cout_pad > co:          # pad last-layer output channels to 8
            wmat = jnp.pad(wmat, ((0, cout_pad - co), (0, 0)))
            bcol = jnp.pad(bcol, ((0, cout_pad - co), (0, 0)))
            acol = jnp.pad(acol, ((0, cout_pad - co), (0, 0)))
        params.append(dict(
            w_oihw=w_oihw, b=b, a=a,
            wmat=wmat.astype(jnp.bfloat16),           # bf16 MXU operand
            bcol=bcol.astype(jnp.float32),
            acol=acol.astype(jnp.float32),
        ))
    return params


def denoising_block_pallas(x_nchw, params, block_batch=None):
    """Forward pass matching DenoisingBlock.forward (input/output NCHW)."""
    N, Cin, H, W = x_nchw.shape
    HW = H * W
    inner = int(params[0]["b"].shape[0])
    Cout = int(params[3]["b"].shape[0])
    assert Cout == Cin, "residual add requires out_channels == in_channels"

    seg_real = (Cin, inner, inner, inner)
    seg_pad = tuple(_round_up(c, 8) for c in seg_real)
    cout_pad = _round_up(Cout, 8)
    assert cout_pad == seg_pad[0]
    slab_rows = sum(seg_pad)

    # Pack several batch elements into the lane dim (amortizes per-step cost,
    # fills the MXU N-dim); keep the bf16 patch footprint modest.
    if block_batch is None:
        block_batch = 1
        budget = 8 * 1024 * 1024
        for bt in range(1, N + 1):
            if N % bt == 0 and 9 * slab_rows * bt * HW * 2 <= budget:
                block_batch = bt
    Bt = block_batch
    assert N % Bt == 0
    L = Bt * HW

    # Channel-major packed layout (C, N*HW); wrapper transposes are tiny, one-off.
    x2 = jnp.transpose(x_nchw.reshape(N, Cin, HW), (1, 0, 2)).reshape(Cin, N * HW)
    masks = _build_edge_masks(H, W, Bt, jnp.float32)

    inputs = [x2, masks]
    in_specs = [pl.BlockSpec((Cin, L), lambda n: (0, n)),
                pl.BlockSpec((9, L), lambda n: (0, 0))]
    for p in params:
        for arr in (p["wmat"], p["bcol"], p["acol"]):
            inputs.append(arr)
            in_specs.append(pl.BlockSpec(arr.shape, lambda n: (0, 0)))

    kernel = functools.partial(
        _denoising_block_kernel, H=H, W=W, seg_pad=seg_pad,
        roll_np=_roll_matches_numpy())

    # TODO(synk): for large H*W add an H-strip grid axis with a 1-row halo (and
    # an explicit vmem_limit_bytes) so the patch scratch stays inside v7x VMEM.
    out = pl.pallas_call(
        kernel,
        out_shape=jax.ShapeDtypeStruct((cout_pad, N * HW), x_nchw.dtype),
        grid=(N // Bt,),
        in_specs=in_specs,
        out_specs=pl.BlockSpec((cout_pad, L), lambda n: (0, n)),
        scratch_shapes=[
            pltpu.VMEM((9 * slab_rows, L), jnp.bfloat16),   # incremental im2col
        ],
        compiler_params=pltpu.CompilerParams(
            dimension_semantics=("parallel",)),
    )(*inputs)

    out = out[:Cout].reshape(Cout, N, HW)
    return jnp.transpose(out, (1, 0, 2)).reshape(N, Cout, H, W)


# ---------------- reference (plain JAX, for correctness check) ----------------
def _ref_conv_prelu(x, w, b, a, cast_bf16):
    if cast_bf16:  # emulate the kernel's bf16 MXU operands (f32 accumulate)
        x = x.astype(jnp.bfloat16).astype(jnp.float32)
        w = w.astype(jnp.bfloat16).astype(jnp.float32)
    y = jax.lax.conv_general_dilated(
        x, w, window_strides=(1, 1), padding="SAME",
        dimension_numbers=("NCHW", "OIHW", "NCHW"),
        precision=jax.lax.Precision.HIGHEST)
    y = y + b[None, :, None, None]
    return jnp.where(y > 0, y, a[None, :, None, None] * y)


def denoising_block_ref(x, params, cast_bf16=False):
    out0 = _ref_conv_prelu(x, params[0]["w_oihw"], params[0]["b"], params[0]["a"], cast_bf16)
    cat0 = jnp.concatenate([x, out0], axis=1)
    out1 = _ref_conv_prelu(cat0, params[1]["w_oihw"], params[1]["b"], params[1]["a"], cast_bf16)
    cat1 = jnp.concatenate([cat0, out1], axis=1)
    out2 = _ref_conv_prelu(cat1, params[2]["w_oihw"], params[2]["b"], params[2]["a"], cast_bf16)
    cat2 = jnp.concatenate([cat1, out2], axis=1)
    out3 = _ref_conv_prelu(cat2, params[3]["w_oihw"], params[3]["b"], params[3]["a"], cast_bf16)
    return out3 + x


if __name__ == "__main__":
    key = jax.random.PRNGKey(0)
    kx, kp = jax.random.split(key)

    # small shapes: batch=2, in_channels=out_channels=4, inner_channels=8, 16x16
    N, Cin, H, W = 2, 4, 16, 16
    inner, Cout = 8, 4
    x = jax.random.normal(kx, (N, Cin, H, W), jnp.float32)
    params = init_denoising_block_params(kp, Cin, inner, Cout)

    out = jax.block_until_ready(denoising_block_pallas(x, params))
    ref_bf = jax.block_until_ready(denoising_block_ref(x, params, cast_bf16=True))
    ref_32 = jax.block_until_ready(denoising_block_ref(x, params, cast_bf16=False))

    assert out.shape == (N, Cout, H, W), out.shape
    err_bf = float(jnp.max(jnp.abs(out - ref_bf)))
    err_32 = float(jnp.max(jnp.abs(out - ref_32)))
    # exact-logic check vs a reference with the same bf16 operand rounding
    assert jnp.allclose(out, ref_bf, rtol=1e-2, atol=1e-2), err_bf
    # sanity check vs the full-f32 reference (looser tol: bf16 MXU operands)
    assert jnp.allclose(out, ref_32, rtol=5e-2, atol=5e-2), err_32

    print("KERNEL_OK")
</pallas_src>

<mosaic_0001>
module attributes {stable_mosaic.version = 11 : i64} {
  func.func @k(%arg0: memref<8x128xf32, #tpu.memory_space<vmem>>, %arg1: memref<8x128xf32, #tpu.memory_space<vmem>>) attributes {dimension_semantics = [], scalar_prefetch = 0 : i64, scratch_operands = 0 : i64, tpu.core_type = #tpu.core_type<tc>} {
    %c0 = arith.constant 0 : index
    %c0_0 = arith.constant 0 : index
    %0 = vector.load %arg0[%c0, %c0_0] : memref<8x128xf32, #tpu.memory_space<vmem>>, vector<8x128xf32>
    %c1_i32 = arith.constant 1 : i32
    %1 = tpu.dynamic_rotate %0 by %c1_i32 dim 1 : vector<8x128xf32>, i32 -> vector<8x128xf32>
    %c0_1 = arith.constant 0 : index
    %c0_2 = arith.constant 0 : index
    %2 = vector.load %arg1[%c0_1, %c0_2] : memref<8x128xf32, #tpu.memory_space<vmem>>, vector<8x128xf32>
    tpu.vector_store %arg1[%c0_1, %c0_2], %1 {strides = array<i32>} : memref<8x128xf32, #tpu.memory_space<vmem>>, vector<8x128xf32>,
    return
  }
}

</mosaic_0001>

<llo_original>
// kernel: tpu_custom_call.1
$region0: #{tpu_custom_call.1}
  #allocation0 [shape = 'u32[]', space=smem, size = 0x4, offset = 0x4, fixed_abs, tag = 'smem constant byte address 0x4 - core index']
  #allocation1 [shape = 'u32[144,128]{1,0:T(1,128)}', space=vmem, size = 0x12000, scoped, tag = 'internal scratch']
  %s0 = inlined_call_operand.hbm [shape: f32[8,128], index: 0, kind: input, shape index: {}]
  %s1 = inlined_call_operand.hbm [shape: f32[8,128], index: 1, kind: output, shape index: {}]
  %s2 = sld [smem:[#allocation0]]
  $region18: #{tpu_custom_call.1} parent=0
    _
  %s4 = ssub.s32 1, %s2
  %s5 = scalar_select 0, %s4, %s2
  $region1: #{tpu_custom_call.1} parent=0
    #allocation2 [shape = 'u8[4096]{0}', space=vmem, size = 0x1000, scoped, tag = 'input window, operand 0, single buffered']
    #allocation3 [shape = 's32[1]{0}', space=sflag, size = 0x4, scoped, tag = 'scoped memory for tpu_custom_call.1']
    #allocation4 [shape = 's32[1]{0}', space=sflag, size = 0x4, scoped, tag = 'scoped memory for tpu_custom_call.1']
    #allocation5 [shape = 'u8[4096]{0}', space=vmem, size = 0x1000, scoped, tag = 'output window, operand 0, single buffered']
    %6 = vsyncpa [#allocation3], 0
    %7 = vsyncpa [#allocation4], 0
    // Predicated region
    $region2: #{tpu_custom_call.1} parent=1 // pred_check
      _
    $region3: #{tpu_custom_call.1} parent=1 // pred_check_branch
      %9 = sbr.rel (0) target = $region5
    $region4: #{tpu_custom_call.1} parent=1 // pred_region
      %s11 = ssub.s32 128, 128
      %12 = vsyncadd [#allocation3], %s11
      %s14 = sshll.u32 [#allocation2], 4
      %s15 = int_to_ptr.vmem [resolvable:$true] %s14
      %17 = dma.hbm_to_vmem [thread:$0]  %s0, 128, %s15, [#allocation3]
    $region5: #{tpu_custom_call.1} parent=1 // pred_fallthru
      _
    // Predicated region
    $region6: #{tpu_custom_call.1} parent=1 // pred_check
      _
    $region7: #{tpu_custom_call.1} parent=1 // pred_check_branch
      %19 = sbr.rel (0) target = $region9
    $region8: #{tpu_custom_call.1} parent=1 // pred_region
      %20 = dma.done [#allocation3], 128
    $region9: #{tpu_custom_call.1} parent=1 // pred_fallthru
      _
    %v21 = vld [vmem:[#allocation2] sm:$0xff]
    %22 = vrot.lane.b32.xlu0 %v21, 1
    %v23 = vpop.permute.xlu0 %22
    %24 = vst [vmem:[#allocation5] sm:$0xff] %v23
    // Predicated region
    $region10: #{tpu_custom_call.1} parent=1 // pred_check
      _
    $region11: #{tpu_custom_call.1} parent=1 // pred_check_branch
      %26 = sbr.rel (0) target = $region13
    $region12: #{tpu_custom_call.1} parent=1 // pred_region
      %s28 = ssub.s32 128, 128
      %29 = vsyncadd [#allocation4], %s28
      %s31 = sshll.u32 [#allocation5], 4
      %s32 = int_to_ptr.vmem [resolvable:$true] %s31
      %34 = dma.vmem_to_hbm [thread:$0]  %s32, 128, %s1, [#allocation4]
    $region13: #{tpu_custom_call.1} parent=1 // pred_fallthru
      _
    // Predicated region
    $region14: #{tpu_custom_call.1} parent=1 // pred_check
      _
    $region15: #{tpu_custom_call.1} parent=1 // pred_check_branch
      %36 = sbr.rel (0) target = $region17
    $region16: #{tpu_custom_call.1} parent=1 // pred_region
      %37 = dma.done [#allocation4], 128
    $region17: #{tpu_custom_call.1} parent=1 // pred_fallthru
      _
    %38 = vsyncpa [#allocation3], 1
    %39 = vsyncpa [#allocation4], 1

</llo_original>
